<compile_context>
chip_gen: v5e
topology: v5e:2x2
jax: 0.10.0
libtpu: 0.0.40
codegen_flags: <defaults>
</compile_context>

<pallas_src>
import functools

import jax
import jax.numpy as jnp
from jax.experimental import pallas as pl
from jax.experimental.pallas import tpu as pltpu


def _outconv_kernel(w_ref, b_ref, x_ref, o_ref):
    # w_ref: (C_out, C_in)     b_ref: (C_out, 1)
    # x_ref: (B_T, C_in, T)    o_ref: (B_T, C_out, T)
    w = w_ref[...]
    b = b_ref[...]
    # Static unroll over the (small) fused batch tile: each iteration is a
    # plain MXU matmul with the lane dim T kept dense.
    for i in range(x_ref.shape[0]):
        acc = jnp.dot(w, x_ref[i], preferred_element_type=jnp.float32)
        o_ref[i] = (acc + b).astype(o_ref.dtype)


def _vmem_capacity_bytes():
    """Physical VMEM of the current chip; conservative (v7x-sized) fallback."""
    try:
        info = pltpu.get_tpu_info()
        cap = getattr(info, "vmem_capacity_bytes", None)
        if cap:
            return int(cap)
    except Exception:
        pass
    return 64 * 1024 * 1024


def _pick_tiling(N, HW, C_in, C_out, itemsize, vmem_budget):
    """Choose (batch_tile, tile_hw) for the grid."""

    def step_bytes(bt, t):
        # 2x double-buffered x block + 2x output block + resident W/b
        # (single-buffered) per grid step.
        return itemsize * (2 * bt * C_in * t + 2 * bt * C_out * t
                           + C_in * C_out + C_out * 128)

    # ---- HW tile ----------------------------------------------------------
    if step_bytes(1, HW) <= vmem_budget:
        tile_hw = HW                       # one exact block over the HW axis
    else:
        # Closed-form largest lane-aligned tile that fits the budget.
        avail = vmem_budget // itemsize - C_in * C_out - C_out * 128
        t_fit = avail // (2 * (C_in + C_out))
        t_max = max(128, min((HW // 128) * 128, (t_fit // 128) * 128))
        tile_hw = t_max
        # Prefer a tile that divides HW (no ragged tail -> every store is an
        # unmasked, lane-dense vst), but only within ~25% of the max size.
        for t in range(t_max, max(127, (3 * t_max) // 4), -128):
            if HW % t == 0:
                tile_hw = t
                break
        # TODO(synk): for extreme C_in where even a 128-wide block exceeds the
        # budget, add a C_in-reduction grid axis with a VMEM accumulator.

    n_hw = pl.cdiv(HW, tile_hw)

    # ---- batch tile (amortize per-step overhead for small feature maps) ---
    batch_tile = 1
    if n_hw == 1 and N > 1:
        for bt in range(N, 0, -1):
            if N % bt:
                continue
            if step_bytes(bt, tile_hw) > vmem_budget:
                continue
            if bt == N:
                # Keep >= 2 grid steps so both v7x TensorCores get a shard.
                continue
            batch_tile = bt
            break

    # ---- guarantee >= 2 parallel steps when it is essentially free --------
    if (N // batch_tile) * n_hw < 2 and tile_hw == HW and HW >= 256:
        tile_hw = ((HW + 255) // 256) * 128      # ~HW/2, rounded up to 128
        n_hw = pl.cdiv(HW, tile_hw)

    return batch_tile, tile_hw


def _resident_spec(shape):
    """Constant-index block that stays resident in VMEM; single-buffered."""
    index_map = lambda n, j: (0, 0)
    try:
        return pl.BlockSpec(shape, index_map, pipeline_mode=pl.Buffered(1))
    except TypeError:  # older jax without pipeline_mode support
        return pl.BlockSpec(shape, index_map)


@functools.partial(jax.jit, static_argnames=("tile_hw", "batch_tile"))
def out_conv(x_nchw, weight, bias, tile_hw=None, batch_tile=None):
    """1x1 Conv2d forward (matches nn.Conv2d(in, out, kernel_size=1)).

    x_nchw: (N, C_in, H, W)
    weight: (C_out, C_in, 1, 1)   (PyTorch conv weight layout)
    bias:   (C_out,)
    returns (N, C_out, H, W)
    """
    N, C_in, H, W = x_nchw.shape
    C_out = weight.shape[0]
    HW = H * W

    # Pure reshapes — no transpose, no pad, no extra HBM passes.
    x3d = x_nchw.reshape(N, C_in, HW)
    w2d = weight.reshape(C_out, C_in)
    b2d = bias.reshape(C_out, 1)

    itemsize = jnp.dtype(x_nchw.dtype).itemsize
    vmem_cap = _vmem_capacity_bytes()
    budget = int(0.35 * vmem_cap)        # ~22 MiB on v7x, ~45 MiB on v5e/v6e

    auto_bt, auto_t = _pick_tiling(N, HW, C_in, C_out, itemsize, budget)
    if tile_hw is None:
        tile_hw = auto_t
    if batch_tile is None:
        batch_tile = auto_bt

    grid = (pl.cdiv(N, batch_tile), pl.cdiv(HW, tile_hw))

    # Grant the compiler at least what this tiling needs (plus headroom),
    # capped well under physical VMEM (important on v7x's 64 MiB).
    needed = itemsize * (2 * batch_tile * (C_in + C_out) * tile_hw
                         + C_in * C_out + C_out * 128)
    vmem_limit = int(min(0.9 * vmem_cap,
                         max(0.45 * vmem_cap, needed + (4 << 20))))

    y3d = pl.pallas_call(
        _outconv_kernel,
        out_shape=jax.ShapeDtypeStruct((N, C_out, HW), x_nchw.dtype),
        grid_spec=pltpu.PrefetchScalarGridSpec(
            num_scalar_prefetch=0,
            grid=grid,
            in_specs=[
                _resident_spec((C_out, C_in)),          # weight, VMEM-resident
                _resident_spec((C_out, 1)),             # bias, VMEM-resident
                # Streaming activation tile, NCHW-native. If DMA is still
                # exposed in a trace, sweep pipeline_mode=pl.Buffered(3) here.
                pl.BlockSpec((batch_tile, C_in, tile_hw),
                             lambda n, j: (n, 0, j)),
            ],
            out_specs=pl.BlockSpec((batch_tile, C_out, tile_hw),
                                   lambda n, j: (n, 0, j)),
        ),
        compiler_params=pltpu.CompilerParams(
            dimension_semantics=("parallel", "parallel"),
            vmem_limit_bytes=vmem_limit),
    )(w2d, b2d, x3d)

    return y3d.reshape(N, C_out, H, W)


def _reference(x_nchw, weight, bias):
    # Pure-JAX reference for a 1x1 conv (matches PyTorch nn.Conv2d(k=1)).
    w2d = weight.reshape(weight.shape[0], weight.shape[1])
    return jnp.einsum("nchw,oc->nohw", x_nchw, w2d) + bias[None, :, None, None]


def _make_params(key, c_in, c_out):
    # Mimic nn.Conv2d default init: U(-1/sqrt(fan_in), 1/sqrt(fan_in)).
    k_w, k_b = jax.random.split(key)
    bound = 1.0 / (c_in ** 0.5)
    w = jax.random.uniform(k_w, (c_out, c_in, 1, 1), minval=-bound,
                           maxval=bound, dtype=jnp.float32)
    b = jax.random.uniform(k_b, (c_out,), minval=-bound, maxval=bound,
                           dtype=jnp.float32)
    return w, b


if __name__ == "__main__":
    key = jax.random.PRNGKey(0)
    k1, k2, k3, kp1, kp2, kp3 = jax.random.split(key, 6)

    # --- Test 1: shapes implied by the module (small, single HW block). ----
    N, C_in, C_out, H, W = 2, 4, 3, 16, 16
    x = jax.random.normal(k1, (N, C_in, H, W), dtype=jnp.float32)
    w, b = _make_params(kp1, C_in, C_out)
    y = jax.block_until_ready(out_conv(x, w, b))
    assert y.shape == (N, C_out, H, W)
    assert jnp.allclose(y, _reference(x, w, b), atol=1e-5, rtol=1e-5)

    # --- Test 2: ragged HW (H*W not a multiple of 128) + multi-HW-tile. ----
    N2, Ci2, Co2, H2, W2 = 4, 8, 5, 18, 14          # HW = 252
    x2 = jax.random.normal(k2, (N2, Ci2, H2, W2), dtype=jnp.float32)
    w2, b2 = _make_params(kp2, Ci2, Co2)
    y2 = jax.block_until_ready(out_conv(x2, w2, b2, tile_hw=128, batch_tile=1))
    assert y2.shape == (N2, Co2, H2, W2)
    assert jnp.allclose(y2, _reference(x2, w2, b2), atol=1e-5, rtol=1e-5)

    # --- Test 3: small feature map -> fused batch tile via auto policy. ----
    N3, Ci3, Co3, H3, W3 = 4, 8, 6, 8, 16           # HW = 128 -> batch_tile 2
    x3 = jax.random.normal(k3, (N3, Ci3, H3, W3), dtype=jnp.float32)
    w3, b3 = _make_params(kp3, Ci3, Co3)
    y3 = jax.block_until_ready(out_conv(x3, w3, b3))
    assert y3.shape == (N3, Co3, H3, W3)
    assert jnp.allclose(y3, _reference(x3, w3, b3), atol=1e-5, rtol=1e-5)

    print("KERNEL_OK")
</pallas_src>

<mosaic_0001>
module attributes {stable_mosaic.version = 11 : i64} {
  func.func @_outconv_kernel(%arg0: i32, %arg1: i32, %arg2: memref<3x4xf32, #tpu.memory_space<vmem>>, %arg3: memref<3x1xf32, #tpu.memory_space<vmem>>, %arg4: memref<1x4x256xf32, #tpu.memory_space<vmem>>, %arg5: memref<1x3x256xf32, #tpu.memory_space<vmem>>) attributes {dimension_semantics = [#tpu.dimension_semantics<parallel>, #tpu.dimension_semantics<parallel>], iteration_bounds = array<i64: 2, 1>, scalar_prefetch = 0 : i64, scratch_operands = 0 : i64, tpu.core_type = #tpu.core_type<tc>, window_params = [{pipeline_mode = #tpu.pipeline_mode<synchronous>, transform_indices = @transform_0, window_bounds = array<i64: 3, 4>}, {pipeline_mode = #tpu.pipeline_mode<synchronous>, transform_indices = @transform_1, window_bounds = array<i64: 3, 1>}, {transform_indices = @transform_2, window_bounds = array<i64: 1, 4, 256>}, {transform_indices = @transform_3, window_bounds = array<i64: 1, 3, 256>}]} {
    %c0 = arith.constant 0 : index
    %c0_0 = arith.constant 0 : index
    %0 = vector.load %arg2[%c0, %c0_0] : memref<3x4xf32, #tpu.memory_space<vmem>>, vector<3x4xf32>
    %c0_1 = arith.constant 0 : index
    %c0_2 = arith.constant 0 : index
    %1 = vector.load %arg3[%c0_1, %c0_2] : memref<3x1xf32, #tpu.memory_space<vmem>>, vector<3x1xf32>
    %c0_3 = arith.constant 0 : index
    %c0_4 = arith.constant 0 : index
    %c0_5 = arith.constant 0 : index
    %2 = vector.load %arg4[%c0_3, %c0_4, %c0_5] : memref<1x4x256xf32, #tpu.memory_space<vmem>>, vector<1x4x256xf32>
    %3 = vector.shape_cast %2 : vector<1x4x256xf32> to vector<4x256xf32>
    %cst = arith.constant dense<0.000000e+00> : vector<3x256xf32>
    %4 = tpu.matmul %0, %3, %cst {dimension_numbers = #tpu.dot_dimension_numbers<[1], [0], [0], [1], [0, 0, 1, 1], [], []>} : vector<3x4xf32>, vector<4x256xf32>, vector<3x256xf32> -> vector<3x256xf32>
    %5 = vector.broadcast %1 : vector<3x1xf32> to vector<3x256xf32>
    %6 = arith.addf %4, %5 : vector<3x256xf32>
    %c0_6 = arith.constant 0 : index
    %c0_7 = arith.constant 0 : index
    %c0_8 = arith.constant 0 : index
    %7 = vector.load %arg5[%c0_6, %c0_7, %c0_8] : memref<1x3x256xf32, #tpu.memory_space<vmem>>, vector<1x3x256xf32>
    %8 = vector.shape_cast %7 : vector<1x3x256xf32> to vector<3x256xf32>
    %9 = vector.shape_cast %6 : vector<3x256xf32> to vector<1x3x256xf32>
    tpu.vector_store %arg5[%c0_6, %c0_7, %c0_8], %9 {strides = array<i32>} : memref<1x3x256xf32, #tpu.memory_space<vmem>>, vector<1x3x256xf32>,
    return
  }
  func.func @transform_0(%arg0: i32, %arg1: i32) -> (i32, i32) {
    %c0_i32 = arith.constant 0 : i32
    %c0_i32_0 = arith.constant 0 : i32
    %c0_i32_1 = arith.constant 0 : i32
    return %c0_i32, %c0_i32_0 : i32, i32
  }
  func.func @transform_1(%arg0: i32, %arg1: i32) -> (i32, i32) {
    %c0_i32 = arith.constant 0 : i32
    %c0_i32_0 = arith.constant 0 : i32
    %c0_i32_1 = arith.constant 0 : i32
    return %c0_i32, %c0_i32_0 : i32, i32
  }
  func.func @transform_2(%arg0: i32, %arg1: i32) -> (i32, i32, i32) {
    %c0_i32 = arith.constant 0 : i32
    %c0_i32_0 = arith.constant 0 : i32
    return %arg0, %c0_i32, %arg1 : i32, i32, i32
  }
  func.func @transform_3(%arg0: i32, %arg1: i32) -> (i32, i32, i32) {
    %c0_i32 = arith.constant 0 : i32
    %c0_i32_0 = arith.constant 0 : i32
    return %arg0, %c0_i32, %arg1 : i32, i32, i32
  }
}

</mosaic_0001>

<llo_original>
// kernel: out_conv.1
$region0: #{out_conv.1}
  #allocation0 [shape = 'u32[]', space=smem, size = 0x4, offset = 0x4, fixed_abs, tag = 'smem constant byte address 0x4 - core index']
  #allocation1 [shape = 'u32[72,128]{1,0:T(1,128)}', space=vmem, size = 0x9000, scoped, tag = 'internal scratch']
  %s0 = inlined_call_operand.vmem [shape: f32[3,4], index: 0, kind: input, shape index: {}]
  %s1 = inlined_call_operand.vmem [shape: f32[3,1], index: 1, kind: input, shape index: {}]
  %s2 = inlined_call_operand.vmem [shape: f32[2,4,256], index: 2, kind: input, shape index: {}]
  %s3 = inlined_call_operand.vmem [shape: f32[2,3,256], index: 3, kind: output, shape index: {}]
  %s4 = sld [smem:[#allocation0]]
  $region45: #{out_conv.1} parent=0
    _
  %s6 = ssub.s32 1, %s4
  %s7 = scalar_select 0, %s6, %s4
  loop: start=0, step=1, limit=4
  $region2: #{out_conv.1} parent=0 // loop_pre_header
    _
  $region3: #{out_conv.1} parent=0 // loop_header
    %s9 = sphi 0, %s13
    %p10 = scmp.ge.s32.totalorder %s9, 4
    %s16 = sphi 0, %s28
    %s17 = sphi 0, %s24
    %s18 = sphi 0, %s16
    %s19 = sphi 0, %s17
    %s20 = sphi 0, %s18
    %s21 = sphi 0, %s19
    %s29 = sphi 0, %s29
    %s31 = sphi 0, %s29
    %s32 = sphi 0, %s31
    %s46 = sphi 0, %s32
    %s50 = sphi 0, %s50
    %s52 = sphi 0, %s50
    %s53 = sphi 0, %s52
    %s67 = sphi 0, %s53
    %s75 = sphi 0, %s77
    %s78 = sphi 0, %s75
    %s79 = sphi 0, %s78
    %s95 = sphi 0, %s79
    %s103 = sphi 0, %s105
    %s106 = sphi 0, %s103
    %s107 = sphi 0, %s106
    %s123 = sphi 0, %s107
  $region4: #{out_conv.1} parent=0 // loop_header_branch
    %12 = sbr.rel (%p10) target = $region8
  $region5: #{out_conv.1} parent=0 // loop_body
    %s14 = ssub.s32 %s9, 1
    %s15 = ssub.s32 %s9, 2
    %s22 = sadd.s32 1, %s17
    %p23 = scmp.ge.s32.totalorder %s22, 1
    %s24 = scalar_select %p23, 0, %s22
    %s25 = sadd.s32 1, %s16
    %s26 = scalar_select %p23, %s25, %s16
    %p27 = scmp.ge.s32.totalorder %s26, 2
    %s28 = scalar_select %p27, 0, %s26
    %s30 = sadd.s32 %s29, 1
    %p33 = scmp.eq.s32.totalorder %s9, 1
    %p34 = scmp.ne.s32.totalorder %s29, %s31
    %p35 = scmp.eq.s32.totalorder %s9, 0
    %p36 = por %p34, %p35
    %p37 = scmp.ne.s32.totalorder %s29, %s31
    %p38 = scmp.eq.s32.totalorder %s14, 1
    %p39 = por %p37, %p38
    %p40 = scmp.ne.s32.totalorder %s31, %s32
    %p41 = scmp.eq.s32.totalorder %s14, 0
    %p42 = por %p40, %p41
    %p43 = scmp.ne.s32.totalorder %s31, %s32
    %p44 = scmp.eq.s32.totalorder %s15, 1
    %p45 = por %p43, %p44
    %p47 = scmp.ne.s32.totalorder %s32, %s46
    %p48 = scmp.eq.s32.totalorder %s15, 0
    %p49 = por %p47, %p48
    %s51 = sadd.s32 %s50, 1
    %p54 = scmp.eq.s32.totalorder %s9, 1
    %p55 = scmp.ne.s32.totalorder %s50, %s52
    %p56 = scmp.eq.s32.totalorder %s9, 0
    %p57 = por %p55, %p56
    %p58 = scmp.ne.s32.totalorder %s50, %s52
    %p59 = scmp.eq.s32.totalorder %s14, 1
    %p60 = por %p58, %p59
    %p61 = scmp.ne.s32.totalorder %s52, %s53
    %p62 = scmp.eq.s32.totalorder %s14, 0
    %p63 = por %p61, %p62
    %p64 = scmp.ne.s32.totalorder %s52, %s53
    %p65 = scmp.eq.s32.totalorder %s15, 1
    %p66 = por %p64, %p65
    %p68 = scmp.ne.s32.totalorder %s53, %s67
    %p69 = scmp.eq.s32.totalorder %s15, 0
    %p70 = por %p68, %p69
    %s71 = ssub.s32 %s16, %s28
    %s72 = ssub.s32 %s17, %s24
    %s73 = sor.u32 %s71, %s72
    %p74 = scmp.eq.s32.totalorder %s73, 0
    %s76 = sadd.s32 %s75, 1
    %s77 = scalar_select %p74, %s75, %s76
    %p80 = pneg %p74
    %p81 = scmp.eq.s32.totalorder %s9, 1
    %p82 = por %p80, %p81
    %p83 = scmp.ne.s32.totalorder %s75, %s78
    %p84 = scmp.eq.s32.totalorder %s9, 0
    %p85 = por %p83, %p84
    %p86 = scmp.ne.s32.totalorder %s75, %s78
    %p87 = scmp.eq.s32.totalorder %s14, 1
    %p88 = por %p86, %p87
    %p89 = scmp.ne.s32.totalorder %s78, %s79
    %p90 = scmp.eq.s32.totalorder %s14, 0
    %p91 = por %p89, %p90
    %p92 = scmp.ne.s32.totalorder %s78, %s79
    %p93 = scmp.eq.s32.totalorder %s15, 1
    %p94 = por %p92, %p93
    %p96 = scmp.ne.s32.totalorder %s79, %s95
    %p97 = scmp.eq.s32.totalorder %s15, 0
    %p98 = por %p96, %p97
    %s99 = ssub.s32 %s16, %s28
    %s100 = ssub.s32 %s17, %s24
    %s101 = sor.u32 %s99, %s100
    %p102 = scmp.eq.s32.totalorder %s101, 0
    %s104 = sadd.s32 %s103, 1
    %s105 = scalar_select %p102, %s103, %s104
    %p108 = pneg %p102
    %p109 = scmp.eq.s32.totalorder %s9, 1
    %p110 = por %p108, %p109
    %p111 = scmp.ne.s32.totalorder %s103, %s106
    %p112 = scmp.eq.s32.totalorder %s9, 0
    %p113 = por %p111, %p112
    %p114 = scmp.ne.s32.totalorder %s103, %s106
    %p115 = scmp.eq.s32.totalorder %s14, 1
    %p116 = por %p114, %p115
    %p117 = scmp.ne.s32.totalorder %s106, %s107
    %p118 = scmp.eq.s32.totalorder %s14, 0
    %p119 = por %p117, %p118
    %p120 = scmp.ne.s32.totalorder %s106, %s107
    %p121 = scmp.eq.s32.totalorder %s15, 1
    %p122 = por %p120, %p121
    %p124 = scmp.ne.s32.totalorder %s107, %s123
    %p125 = scmp.eq.s32.totalorder %s15, 0
    %p126 = por %p124, %p125
    %p127 = scmp.le.s32.totalorder 1, %s9
    %p128 = scmp.lt.s32.totalorder %s9, 3
    %p129 = pnand %p127, %p128
    %p130 = pneg %p129
    // Predicated region
    $region9: #{out_conv.1} parent=5 // pred_check
      _
    $region10: #{out_conv.1} parent=5 // pred_check_branch
      %132 = sbr.rel (%p129) target = $region12
    $region11: #{out_conv.1} parent=5 // pred_region
      %s133 = ssub.s32 %s9, 1
      // Predicated region
      $region13: #{out_conv.1} parent=11 // pred_check
        %p134 = pneg %p42
      $region14: #{out_conv.1} parent=11 // pred_check_branch
        %136 = sbr.rel (%p134) target = $region16
      $region15: #{out_conv.1} parent=11 // pred_region
        _
      $region16: #{out_conv.1} parent=11 // pred_fallthru
        _
      // Predicated region
      $region17: #{out_conv.1} parent=11 // pred_check
        %p137 = pneg %p63
      $region18: #{out_conv.1} parent=11 // pred_check_branch
        %139 = sbr.rel (%p137) target = $region20
      $region19: #{out_conv.1} parent=11 // pred_region
        _
      $region20: #{out_conv.1} parent=11 // pred_fallthru
        _
    $region12: #{out_conv.1} parent=5 // pred_fallthru
      _
    %p140 = scmp.lt.s32.totalorder %s9, 2
    // Predicated region
    $region21: #{out_conv.1} parent=5 // pred_check
      %p141 = pneg %p140
    $region22: #{out_conv.1} parent=5 // pred_check_branch
      %143 = sbr.rel (%p141) target = $region24
    $region23: #{out_conv.1} parent=5 // pred_region
      // Predicated region
      $region25: #{out_conv.1} parent=23 // pred_check
        %p144 = pneg %p85
      $region26: #{out_conv.1} parent=23 // pred_check_branch
        %146 = sbr.rel (%p144) target = $region28
      $region27: #{out_conv.1} parent=23 // pred_region
        %s147 = smul.u32 2, %s17
        %p148 = scmp.lt.s32.totalorder %s16, 1
        %s149 = scalar_select %p148, %s16, 1
        %p150 = scmp.lt.s32.totalorder %s147, 1
        %s151 = scalar_select %p150, %s147, 1
        %s152 = smul.addr %s149, 2
        %s153 = sadd.s32 %s151, %s152
        %s154 = smul.addr %s153, 4
        %s155 = scalar_lea.vmem %s2, %s154
        %s156 = smul.u32 2, %s17
      $region28: #{out_conv.1} parent=23 // pred_fallthru
        _
    $region24: #{out_conv.1} parent=5 // pred_fallthru
      _
    %p157 = scmp.le.s32.totalorder 1, %s9
    %p158 = scmp.lt.s32.totalorder %s9, 3
    %p159 = pnand %p157, %p158
    %p160 = pneg %p159
    // Predicated region
    $region29: #{out_conv.1} parent=5 // pred_check
      _
    $region30: #{out_conv.1} parent=5 // pred_check_branch
      %162 = sbr.rel (%p159) target = $region32
    $region31: #{out_conv.1} parent=5 // pred_region
      %s163 = ssub.s32 %s9, 1
      %p164 = pneg %p42
      %p165 = pneg %p39
      %p166 = pneg %p63
      %p167 = pneg %p60
      %s168 = smul.u32 2, %s19
      %p169 = scmp.lt.s32.totalorder %s18, 1
      %s170 = scalar_select %p169, %s18, 1
      %p171 = scmp.lt.s32.totalorder %s168, 1
      %s172 = scalar_select %p171, %s168, 1
      %s173 = smul.addr %s170, 2
      %s174 = sadd.s32 %s172, %s173
      %s175 = smul.addr %s174, 4
      %s176 = scalar_lea.vmem %s2, %s175
      %p177 = pneg %p91
      %p178 = pneg %p88
      %p179 = pneg %p119
      %p180 = pneg %p116
      %s181 = smul.u32 2, %s19
      %p182 = scmp.lt.s32.totalorder %s18, 1
      %s183 = scalar_select %p182, %s18, 1
      %p184 = scmp.lt.s32.totalorder %s181, 1
      %s185 = scalar_select %p184, %s181, 1
      %s186 = smul.addr %s183, 2
      %s187 = sadd.s32 %s185, %s186
      %s188 = smul.addr %s187, 4
      %s189 = scalar_lea.vmem %s3, %s188
      %s190 = smul.u32 2, %s19
      %p191 = scmp.lt.s32.totalorder %s18, 1
      %s192 = scalar_select %p191, %s18, 1
      %p193 = scmp.lt.s32.totalorder %s190, 1
      %s194 = scalar_select %p193, %s190, 1
      %s195 = smul.addr %s192, 2
      %s196 = sadd.s32 %s194, %s195
      %s197 = smul.addr %s196, 4
      %s198 = scalar_lea.vmem %s2, %s197
      %s199 = smul.u32 2, %s19
      %s200 = smul.u32 2, %s19
      %p201 = scmp.lt.s32.totalorder %s18, 1
      %s202 = scalar_select %p201, %s18, 1
      %p203 = scmp.lt.s32.totalorder %s200, 1
      %s204 = scalar_select %p203, %s200, 1
      %s205 = smul.addr %s202, 2
      %s206 = sadd.s32 %s204, %s205
      %s207 = smul.addr %s206, 4
      %s208 = scalar_lea.vmem %s3, %s207
      %s209 = smul.u32 2, %s19
      %v210 = vld [vmem:[%s0] sm:$0x7]
      %v211 = vld [vmem:[%s1] sm:$0x7]
      %v212 = vld [vmem:[%s198] sm:$0xff]
      %214 = vset.pattern.permute.xlu0 0
      %215 = vperm.xlu0 %214, %v211
      %v216 = vpop.permute.xlu0 %215
      %219 = vst [vmem:[#allocation1] ss:$2 sm:$0xff] %v212
      %v220 = vld.sshfl [vmem:[#allocation1] sm:$0xff pattern:$0x75316420]
      %v221 = vld.sshfl [vmem:[#allocation1 + $0x8] sm:$0xff pattern:$0x75316420]
      %vm222 = vcmask 31744
      %v224 = vsel %vm222, %v210, 0
      %vm226 = vcmask 1043456
      %v227 = vsel %vm226, %v220, 0
      %v229 = vsel %vm226, %v221, 0
      %231 = vmatpush.msra.mxu0 0.0
      %232 = vmatpush.msra.mxu0 0.0
      %233 = vmatpush.msra.mxu0 0.0
      %234 = vmatpush.msra.mxu0 0.0
      %235 = vmatpush.msra.mxu0 0.0
      %236 = vmatpush.msra.mxu0 0.0
      %237 = vmatpush.msra.mxu0 0.0
      %238 = vmatpush.msra.mxu0 0.0
      %239 = vmatpush.msra.mxu0 0.0
      %240 = vmatpush.msra.mxu0 0.0
      %241 = vmatpush.msra.mxu0 0.0
      %242 = vmatpush.msra.mxu0 0.0
      %243 = vmatpush.msra.mxu0 0.0
      %244 = vmatpush.msra.mxu0 0.0
      %245 = vmatpush.msra.mxu0 0.0
      %246 = vmatpush.msra.mxu0 %v227
      %247 = vmatmul.f32.gmra.mxu0 %v224
      %v248 = vpop.f32.mrf.mxu0
      %v249 = vadd.f32 %v216, %v248
      %250 = vdwg.mxu0
      %251 = vmatpush.msra.mxu0 0.0
      %252 = vmatpush.msra.mxu0 0.0
      %253 = vmatpush.msra.mxu0 0.0
      %254 = vmatpush.msra.mxu0 0.0
      %255 = vmatpush.msra.mxu0 0.0
      %256 = vmatpush.msra.mxu0 0.0
      %257 = vmatpush.msra.mxu0 0.0
      %258 = vmatpush.msra.mxu0 0.0
      %259 = vmatpush.msra.mxu0 0.0
      %260 = vmatpush.msra.mxu0 0.0
      %261 = vmatpush.msra.mxu0 0.0
      %262 = vmatpush.msra.mxu0 0.0
      %263 = vmatpush.msra.mxu0 0.0
      %264 = vmatpush.msra.mxu0 0.0
      %265 = vmatpush.msra.mxu0 0.0
      %266 = vmatpush.msra.mxu0 %v229
      %267 = vmatmul.f32.gmra.mxu0 %v224
      %v268 = vpop.f32.mrf.mxu0
      %v269 = vadd.f32 %v216, %v268
      %270 = vdwg.mxu0
      %v273 = vrot.slane %v269, 4
      %v274 = vsel %vm226, %v249, %v273
      %276 = vst [vmem:[%s208] sm:$0x77] %v274
      %s277 = smul.u32 2, %s19
      %p278 = scmp.lt.s32.totalorder %s18, 1
      %s279 = scalar_select %p278, %s18, 1
      %p280 = scmp.lt.s32.totalorder %s277, 1
      %s281 = scalar_select %p280, %s277, 1
      %s282 = smul.addr %s279, 2
      %s283 = sadd.s32 %s281, %s282
      %s284 = smul.addr %s283, 4
      %s285 = scalar_lea.vmem %s3, %s284
      // Predicated region
      $region33: #{out_conv.1} parent=31 // pred_check
        %p286 = pneg %p116
      $region34: #{out_conv.1} parent=31 // pred_check_branch
        %288 = sbr.rel (%p286) target = $region36
      $region35: #{out_conv.1} parent=31 // pred_region
        %s289 = smul.u32 2, %s19
      $region36: #{out_conv.1} parent=31 // pred_fallthru
        _
    $region32: #{out_conv.1} parent=5 // pred_fallthru
      _
    %p290 = scmp.le.s32.totalorder 2, %s9
    // Predicated region
    $region37: #{out_conv.1} parent=5 // pred_check
      %p291 = pneg %p290
    $region38: #{out_conv.1} parent=5 // pred_check_branch
      %293 = sbr.rel (%p291) target = $region40
    $region39: #{out_conv.1} parent=5 // pred_region
      %s294 = ssub.s32 %s9, 2
      // Predicated region
      $region41: #{out_conv.1} parent=39 // pred_check
        %p295 = pneg %p122
      $region42: #{out_conv.1} parent=39 // pred_check_branch
        %297 = sbr.rel (%p295) target = $region44
      $region43: #{out_conv.1} parent=39 // pred_region
        %s298 = smul.u32 2, %s21
        %p299 = scmp.lt.s32.totalorder %s20, 1
        %s300 = scalar_select %p299, %s20, 1
        %p301 = scmp.lt.s32.totalorder %s298, 1
        %s302 = scalar_select %p301, %s298, 1
        %s303 = smul.addr %s300, 2
        %s304 = sadd.s32 %s302, %s303
        %s305 = smul.addr %s304, 4
        %s306 = scalar_lea.vmem %s3, %s305
      $region44: #{out_conv.1} parent=39 // pred_fallthru
        _
    $region40: #{out_conv.1} parent=5 // pred_fallthru
      _
  $region6: #{out_conv.1} parent=0 // loop_footer
    %s13 = sadd.s32 1, %s9
  $region7: #{out_conv.1} parent=0 // loop_footer_branch
    %8 = sbr.rel target = $region3
  $region8: #{out_conv.1} parent=0 // loop_exit
    _

</llo_original>
